<compile_context>
chip_gen: v5e
topology: v5e:2x2
jax: 0.10.0
libtpu: 0.0.40
codegen_flags: <defaults>
</compile_context>

<pallas_src>
import jax
import jax.numpy as jnp
from jax.experimental import pallas as pl
from jax.experimental.pallas import tpu as pltpu


def _round_up(x, m):
    return ((x + m - 1) // m) * m


# ----------------------------- Pallas kernel ------------------------------- #
def _gather_matmul_kernel(idx_ref,      # SMEM  [M_pad] int32   (scalar prefetch)
                          feat_ref,     # HBM   [N, Kh] uint32  (packed bf16 pairs)
                          w_lo_ref,     # VMEM  [Kh, C_pad] bf16 (resident)
                          w_hi_ref,     # VMEM  [Kh, C_pad] bf16 (resident)
                          b_ref,        # VMEM  [1, C_pad] f32   (resident)
                          o_ref,        # VMEM  [tile_m, C_pad] bf16
                          xbuf,         # VMEM scratch [tile_m, Kh] uint32
                          sem):         # DMA completion semaphore
    i = pl.program_id(0)
    tile_m, kh = xbuf.shape
    base = i * tile_m

    # In-kernel mini-batch row gather: one DMA per row straight from the HBM
    # feature table.  Each row is a contiguous Kh*4 (= K_pad*2) byte transfer.
    # The gather is step-local (issue all, wait all), so the grid axis can stay
    # "parallel" and shard across both TensorCores on v7x without any
    # cross-step scratch dependence.
    @pl.loop(0, tile_m)
    def _start(r):
        row = idx_ref[base + r]
        pltpu.make_async_copy(feat_ref.at[pl.ds(row, 1), :],
                              xbuf.at[pl.ds(r, 1), :],
                              sem).start()

    @pl.loop(0, tile_m)
    def _wait(r):
        # Per-row waits match the per-row starts 1:1 on the shared semaphore.
        pltpu.make_async_copy(feat_ref.at[pl.ds(0, 1), :],
                              xbuf.at[pl.ds(r, 1), :],
                              sem).wait()

    # Unpack the uint32 words back into the two bf16 feature halves (exact):
    #   low 16 bits  -> feature columns [0, Kh)
    #   high 16 bits -> feature columns [Kh, 2*Kh)
    packed = xbuf[...]
    lo = pltpu.bitcast(packed << jnp.uint32(16), jnp.float32).astype(jnp.bfloat16)
    hi = pltpu.bitcast(packed & jnp.uint32(0xFFFF0000), jnp.float32).astype(jnp.bfloat16)

    acc = jnp.dot(lo, w_lo_ref[...], preferred_element_type=jnp.float32)
    acc = acc + jnp.dot(hi, w_hi_ref[...], preferred_element_type=jnp.float32)
    o_ref[...] = (acc + b_ref[...]).astype(o_ref.dtype)


def multiprop_forward(idx, feat_packed, w_lo, w_hi, bias, *, tile_m):
    """idx: [M_pad] int32 (multiple of tile_m); feat_packed: [N, Kh] uint32;
    w_lo/w_hi: [Kh, C_pad] bf16; bias: [1, C_pad] f32 -> [M_pad, C_pad] bf16."""
    m_pad = idx.shape[0]
    kh = feat_packed.shape[1]
    c_pad = w_lo.shape[1]
    assert m_pad % tile_m == 0
    grid = (m_pad // tile_m,)

    bytes_accessed = (m_pad * kh * 4            # gathered feature rows (packed bf16)
                      + 2 * kh * c_pad * 2      # folded weights (both halves)
                      + c_pad * 4               # bias
                      + m_pad * c_pad * 2       # bf16 output
                      + m_pad * 4)              # row indices

    return pl.pallas_call(
        _gather_matmul_kernel,
        out_shape=jax.ShapeDtypeStruct((m_pad, c_pad), jnp.bfloat16),
        grid_spec=pltpu.PrefetchScalarGridSpec(
            num_scalar_prefetch=1,               # idx -> SMEM (kernel + index_maps)
            grid=grid,
            in_specs=[
                pl.BlockSpec(memory_space=pl.ANY),                   # feature table stays in HBM
                pl.BlockSpec((kh, c_pad), lambda i, idx: (0, 0)),    # resident weights (low half)
                pl.BlockSpec((kh, c_pad), lambda i, idx: (0, 0)),    # resident weights (high half)
                pl.BlockSpec((1, c_pad), lambda i, idx: (0, 0)),     # resident bias
                # TODO(synk): pipeline_mode=pl.Buffered(1) on the three constant
                # blocks would halve their VMEM footprint on VMEM-tight parts.
            ],
            out_specs=pl.BlockSpec((tile_m, c_pad), lambda i, idx: (i, 0)),
            scratch_shapes=[
                pltpu.VMEM((tile_m, kh), jnp.uint32),   # gathered-row landing buffer
                pltpu.SemaphoreType.DMA(()),            # shared row-DMA completion sem
            ],
        ),
        compiler_params=pltpu.CompilerParams(
            dimension_semantics=("parallel",),   # M tiles shard across TCs (v7x)
            vmem_limit_bytes=32 * 1024 * 1024,   # safe on all generations (v7x: 64 MiB phys)
        ),
        cost_estimate=pl.CostEstimate(
            flops=2 * m_pad * (2 * kh) * c_pad,
            transcendentals=0,
            bytes_accessed=int(bytes_accessed),
        ),
    )(idx, feat_packed, w_lo, w_hi, bias)


_jit_multiprop_forward = jax.jit(multiprop_forward, static_argnames=("tile_m",))


# --------------------------- Module-level wrapper --------------------------- #
class ComBaseMultiPropSGModelPallas:
    """JAX/Pallas re-implementation of ComBaseMultiPropSGModel's forward pass."""

    LANE = 128
    VMEM_BUDGET = 24 * 1024 * 1024   # headroom under the 32 MiB scoped VMEM limit

    def __init__(self, num_ops, num_hops, feat_dim, num_classes, key):
        self.P = num_ops
        self.num_hops = num_hops
        self.F = feat_dim
        self.C = num_classes
        k = jax.random.split(key, 4)
        # deterministic parameter init (synthetic, no checkpoint load)
        self.agg_w_real = jax.random.normal(k[0], (num_ops,), jnp.float32) * 0.1
        self.agg_w_imag = jax.random.normal(k[1], (num_ops,), jnp.float32) * 0.1
        self.W_r = jax.random.normal(k[2], (feat_dim, num_classes), jnp.float32) * 0.05
        self.W_i = jax.random.normal(k[3], (feat_dim, num_classes), jnp.float32) * 0.05
        self.b = jnp.zeros((1, num_classes), jnp.float32)

        self.K = 2 * num_ops * feat_dim                      # concat feature width
        # K_pad multiple of 2*LANE so each packed half (Kh) stays lane-dense.
        self.K_pad = _round_up(self.K, 2 * self.LANE)
        self.Kh = self.K_pad // 2
        self.C_pad = _round_up(num_classes, self.LANE)       # lane-dense output

        self.real_processed_feature_list = None
        self.imag_processed_feature_list = None
        self.feat_packed = None                              # [N, Kh] uint32
        self._params_cache = None                            # cached folded params

    # ------------------------------------------------------------------ #
    def preprocess(self, adj, feature):
        """Plain-JAX glue: per-operator propagation (adj powers) + non-learnable
        'mean' message aggregation over hops -> P per-operator features, then one
        lane-dense packed-uint32 feature table [N, Kh] for the in-kernel gather."""
        real_list, imag_list = [], []
        adj_t = adj.T
        for i in range(self.P):
            alpha = 0.5 + 0.25 * i            # operator-specific propagation strength
            real_hops, imag_hops = [], []
            xr, xi = feature, feature
            for _ in range(self.num_hops):
                real_hops.append(xr)
                imag_hops.append(xi)
                xr = alpha * (adj @ xr)        # real-part propagation
                xi = alpha * (adj_t @ xi)      # imag-part propagation (transpose walk)
            real_list.append(jnp.mean(jnp.stack(real_hops, 0), axis=0))
            imag_list.append(jnp.mean(jnp.stack(imag_hops, 0), axis=0))
        self.real_processed_feature_list = real_list
        self.imag_processed_feature_list = imag_list

        # columns = [real_0 | ... | real_{P-1} | imag_0 | ... | imag_{P-1} | 0-pad]
        table = jnp.concatenate(real_list + imag_list, axis=1)          # [N, K]
        if self.K_pad > self.K:
            table = jnp.pad(table, ((0, 0), (0, self.K_pad - self.K)))
        tb = table.astype(jnp.bfloat16)
        # Pack the two column halves into one uint32 word each:
        #   low 16 bits <- columns [0, Kh), high 16 bits <- columns [Kh, K_pad).
        # Keeps bf16-level HBM traffic while making single-row gather DMAs
        # 32-bit granular (no bf16 sublane-packing constraints on the dst).
        lo_u32 = jax.lax.bitcast_convert_type(tb[:, :self.Kh], jnp.uint16).astype(jnp.uint32)
        hi_u32 = jax.lax.bitcast_convert_type(tb[:, self.Kh:], jnp.uint16).astype(jnp.uint32)
        self.feat_packed = lo_u32 | (hi_u32 << jnp.uint32(16))          # [N, Kh] uint32

    # ------------------------------------------------------------------ #
    def _folded_params(self):
        """Fold the softmaxed learnable aggregation weights into the classifier
        (cached; recomputed only if parameters are replaced):
        out = sum_p wr[p]*real_p @ W_r + sum_p wi[p]*imag_p @ W_i + b."""
        if self._params_cache is None:
            w_real = jax.nn.softmax(self.agg_w_real)
            w_imag = jax.nn.softmax(self.agg_w_imag)
            blocks = ([w_real[p] * self.W_r for p in range(self.P)]
                      + [w_imag[p] * self.W_i for p in range(self.P)])
            w_fold = jnp.concatenate(blocks, axis=0)                     # [K, C]
            w_fold = jnp.pad(
                w_fold, ((0, self.K_pad - self.K), (0, self.C_pad - self.C)))
            w_lo = w_fold[:self.Kh].astype(jnp.bfloat16)                 # pairs with low 16 bits
            w_hi = w_fold[self.Kh:].astype(jnp.bfloat16)                 # pairs with high 16 bits
            b_pad = jnp.pad(self.b, ((0, 0), (0, self.C_pad - self.C)))
            self._params_cache = (w_lo, w_hi, b_pad)
        return self._params_cache

    # ------------------------------------------------------------------ #
    def _vmem_estimate(self, tile_m):
        xbuf = tile_m * self.Kh * 4                    # gathered packed rows
        unpack = 2 * tile_m * self.Kh * (4 + 2)        # lo/hi f32 + bf16 temporaries
        weights = 2 * 2 * self.Kh * self.C_pad * 2     # two halves, pipeliner double-buffered
        bias = 2 * self.C_pad * 4
        out = 2 * tile_m * self.C_pad * 2
        acc = tile_m * self.C_pad * 4
        return xbuf + unpack + weights + bias + out + acc

    def _choose_tile_m(self, m):
        # Fixed, bucketed tile sizes (bounded set of pallas_call specializations);
        # keep >= 2 grid steps whenever the batch allows so both v7x TensorCores
        # get work; guard against the VMEM budget for large K.
        m_aligned = _round_up(max(int(m), 1), self.LANE)
        tile = 128
        for cand in (512, 256, 128):
            if m_aligned >= 2 * cand:
                tile = cand
                break
        while tile > 128 and self._vmem_estimate(tile) > self.VMEM_BUDGET:
            tile //= 2
        return tile

    # ------------------------------------------------------------------ #
    def forward(self, idx):
        idx = jnp.asarray(idx, jnp.int32)
        m = idx.shape[0]
        tile_m = self._choose_tile_m(m)
        m_pad = _round_up(m, tile_m)
        if m_pad > m:
            idx = jnp.pad(idx, (0, m_pad - m))   # pad rows gather node 0; sliced off below
        w_lo, w_hi, b_pad = self._folded_params()
        out = _jit_multiprop_forward(idx, self.feat_packed, w_lo, w_hi, b_pad,
                                     tile_m=tile_m)
        return out[:m, :self.C].astype(jnp.float32)

    # pure-JAX f32 reference for validation
    def forward_ref(self, idx):
        real_feats = jnp.stack([f[idx] for f in self.real_processed_feature_list], 0)
        imag_feats = jnp.stack([f[idx] for f in self.imag_processed_feature_list], 0)
        w_real = jax.nn.softmax(self.agg_w_real)
        w_imag = jax.nn.softmax(self.agg_w_imag)
        real_agg = jnp.einsum('p,pmf->mf', w_real, real_feats)
        imag_agg = jnp.einsum('p,pmf->mf', w_imag, imag_feats)
        return real_agg @ self.W_r + imag_agg @ self.W_i + self.b


# TODO(synk): postprocess() (softmax + post graph propagation on host numpy) is not
# part of the hot forward path and is left unimplemented.
# TODO(synk): per-generation tuning (larger tiles / higher vmem_limit on 128 MiB
# v5e/v6e parts) is deliberately left at the conservative all-generation setting.

if __name__ == "__main__":
    key = jax.random.PRNGKey(0)
    k_adj, k_feat, k_model, k_idx = jax.random.split(key, 4)

    N, F, C, P, HOPS = 64, 32, 8, 3, 3   # nodes, feat, classes, ops, hops

    # synthetic symmetric-normalized adjacency and node features
    a = jax.random.uniform(k_adj, (N, N), jnp.float32)
    a = (a + a.T) * 0.5
    deg = jnp.sum(a, axis=1)
    adj = a / jnp.sqrt(deg[:, None] * deg[None, :])
    feature = jax.random.normal(k_feat, (N, F), jnp.float32)

    model = ComBaseMultiPropSGModelPallas(P, HOPS, F, C, k_model)
    model.preprocess(adj, feature)

    # batch 1: small contiguous mini-batch (grid = 1 step)
    idx_a = jnp.arange(16, dtype=jnp.int32)
    out_a = jax.block_until_ready(model.forward(idx_a))
    ref_a = jax.block_until_ready(model.forward_ref(idx_a))
    assert out_a.shape == (16, C), out_a.shape
    err_a = float(jnp.max(jnp.abs(out_a - ref_a)))
    assert err_a < 5e-2, f"max abs err (batch a) {err_a}"

    # batch 2: larger scattered/repeated mini-batch (grid = 2 steps; exercises the
    # in-kernel gather with non-contiguous row ids and the padded tail rows).
    idx_b = jax.random.randint(k_idx, (200,), 0, N, dtype=jnp.int32)
    out_b = jax.block_until_ready(model.forward(idx_b))
    ref_b = jax.block_until_ready(model.forward_ref(idx_b))
    assert out_b.shape == (200, C), out_b.shape
    err_b = float(jnp.max(jnp.abs(out_b - ref_b)))
    assert err_b < 5e-2, f"max abs err (batch b) {err_b}"

    print("KERNEL_OK")
</pallas_src>

<mosaic_0001>
module attributes {stable_mosaic.version = 11 : i64} {
  func.func @_gather_matmul_kernel(%arg0: i32, %arg1: memref<128xi32, #tpu.memory_space<smem>>, %arg2: memref<64x128xi32, #tpu.memory_space<any>>, %arg3: memref<128x128xbf16, #tpu.memory_space<vmem>>, %arg4: memref<128x128xbf16, #tpu.memory_space<vmem>>, %arg5: memref<1x128xf32, #tpu.memory_space<vmem>>, %arg6: memref<128x128xbf16, #tpu.memory_space<vmem>>, %arg7: memref<128x128xi32, #tpu.memory_space<vmem>>, %arg8: memref<!tpu.dma_semaphore, #tpu.memory_space<semaphore_mem>>) attributes {dimension_semantics = [#tpu.dimension_semantics<parallel>], iteration_bounds = array<i64: 1>, scalar_prefetch = 1 : i64, scratch_operands = 2 : i64, tpu.core_type = #tpu.core_type<tc>, window_params = [{}, {pipeline_mode = #tpu.pipeline_mode<synchronous>, transform_indices = @transform_1, window_bounds = array<i64: 128, 128>}, {pipeline_mode = #tpu.pipeline_mode<synchronous>, transform_indices = @transform_2, window_bounds = array<i64: 128, 128>}, {pipeline_mode = #tpu.pipeline_mode<synchronous>, transform_indices = @transform_3, window_bounds = array<i64: 1, 128>}, {transform_indices = @transform_4, window_bounds = array<i64: 128, 128>}]} {
    %c128_i32 = arith.constant 128 : i32
    %0 = arith.muli %arg0, %c128_i32 : i32
    %c0_i32 = arith.constant 0 : i32
    %c128_i32_0 = arith.constant 128 : i32
    %1 = arith.addi %c0_i32, %c128_i32_0 : i32
    %c1_i32 = arith.constant 1 : i32
    scf.for %arg9 = %c0_i32 to %1 step %c1_i32  : i32 {
      %c1_i32_16 = arith.constant 1 : i32
      %22 = arith.muli %arg9, %c1_i32_16 : i32
      %c0_i32_17 = arith.constant 0 : i32
      %23 = arith.addi %c0_i32_17, %22 : i32
      %24 = arith.addi %0, %23 : i32
      %25 = arith.index_cast %24 : i32 to index
      %26 = memref.load %arg1[%25] : memref<128xi32, #tpu.memory_space<smem>>
      %c0_i32_18 = arith.constant 0 : i32
      %27 = tpu.memref_slice %arg2[%26, %c0_i32_18] : memref<64x128xi32, #tpu.memory_space<any>> -> memref<1x128xi32, #tpu.memory_space<any>>
      %c0_i32_19 = arith.constant 0 : i32
      %28 = tpu.memref_slice %arg7[%23, %c0_i32_19] : memref<128x128xi32, #tpu.memory_space<vmem>> -> memref<1x128xi32, #tpu.memory_space<vmem>>
      tpu.enqueue_dma source(%27 : memref<1x128xi32, #tpu.memory_space<any>>) target(%28 : memref<1x128xi32, #tpu.memory_space<vmem>>) target_semaphore(%arg8 : memref<!tpu.dma_semaphore, #tpu.memory_space<semaphore_mem>>)
    }
    %c128_i32_1 = arith.constant 128 : i32
    %c0_i32_2 = arith.constant 0 : i32
    %c128_i32_3 = arith.constant 128 : i32
    %2 = arith.addi %c0_i32_2, %c128_i32_3 : i32
    %c1_i32_4 = arith.constant 1 : i32
    scf.for %arg9 = %c0_i32_2 to %2 step %c1_i32_4  : i32 {
      %c1_i32_16 = arith.constant 1 : i32
      %22 = arith.muli %arg9, %c1_i32_16 : i32
      %c0_i32_17 = arith.constant 0 : i32
      %23 = arith.addi %c0_i32_17, %22 : i32
      %c0_i32_18 = arith.constant 0 : i32
      %c0_i32_19 = arith.constant 0 : i32
      %24 = tpu.memref_slice %arg2[%c0_i32_18, %c0_i32_19] : memref<64x128xi32, #tpu.memory_space<any>> -> memref<1x128xi32, #tpu.memory_space<any>>
      %c0_i32_20 = arith.constant 0 : i32
      %25 = tpu.memref_slice %arg7[%23, %c0_i32_20] : memref<128x128xi32, #tpu.memory_space<vmem>> -> memref<1x128xi32, #tpu.memory_space<vmem>>
      tpu.wait_dma2 semaphore(%arg8 : memref<!tpu.dma_semaphore, #tpu.memory_space<semaphore_mem>>) src(%24 : memref<1x128xi32, #tpu.memory_space<any>>) dst(%25 : memref<1x128xi32, #tpu.memory_space<vmem>>)
    }
    %c128_i32_5 = arith.constant 128 : i32
    %c0 = arith.constant 0 : index
    %c0_6 = arith.constant 0 : index
    %3 = vector.load %arg7[%c0, %c0_6] : memref<128x128xi32, #tpu.memory_space<vmem>>, vector<128x128xi32>
    %c16_i32 = arith.constant 16 : i32
    %4 = vector.broadcast %c16_i32 : i32 to vector<128x128xi32>
    %5 = arith.shli %3, %4 : vector<128x128xi32>
    %6 = tpu.bitcast %5 : vector<128x128xi32> -> vector<128x128xf32>
    %7 = arith.truncf %6 : vector<128x128xf32> to vector<128x128xbf16>
    %c-65536_i32 = arith.constant -65536 : i32
    %8 = vector.broadcast %c-65536_i32 : i32 to vector<128x128xi32>
    %9 = arith.andi %3, %8 : vector<128x128xi32>
    %10 = tpu.bitcast %9 : vector<128x128xi32> -> vector<128x128xf32>
    %11 = arith.truncf %10 : vector<128x128xf32> to vector<128x128xbf16>
    %c0_7 = arith.constant 0 : index
    %c0_8 = arith.constant 0 : index
    %12 = vector.load %arg3[%c0_7, %c0_8] : memref<128x128xbf16, #tpu.memory_space<vmem>>, vector<128x128xbf16>
    %cst = arith.constant dense<0.000000e+00> : vector<128x128xf32>
    %13 = tpu.matmul %7, %12, %cst {dimension_numbers = #tpu.dot_dimension_numbers<[1], [0], [0], [1], [0, 0, 1, 1], [], []>} : vector<128x128xbf16>, vector<128x128xbf16>, vector<128x128xf32> -> vector<128x128xf32>
    %c0_9 = arith.constant 0 : index
    %c0_10 = arith.constant 0 : index
    %14 = vector.load %arg4[%c0_9, %c0_10] : memref<128x128xbf16, #tpu.memory_space<vmem>>, vector<128x128xbf16>
    %cst_11 = arith.constant dense<0.000000e+00> : vector<128x128xf32>
    %15 = tpu.matmul %11, %14, %cst_11 {dimension_numbers = #tpu.dot_dimension_numbers<[1], [0], [0], [1], [0, 0, 1, 1], [], []>} : vector<128x128xbf16>, vector<128x128xbf16>, vector<128x128xf32> -> vector<128x128xf32>
    %16 = arith.addf %13, %15 : vector<128x128xf32>
    %c0_12 = arith.constant 0 : index
    %c0_13 = arith.constant 0 : index
    %17 = vector.load %arg5[%c0_12, %c0_13] : memref<1x128xf32, #tpu.memory_space<vmem>>, vector<1x128xf32>
    %18 = vector.broadcast %17 : vector<1x128xf32> to vector<128x128xf32>
    %19 = arith.addf %16, %18 : vector<128x128xf32>
    %20 = arith.truncf %19 : vector<128x128xf32> to vector<128x128xbf16>
    %c0_14 = arith.constant 0 : index
    %c0_15 = arith.constant 0 : index
    %21 = vector.load %arg6[%c0_14, %c0_15] : memref<128x128xbf16, #tpu.memory_space<vmem>>, vector<128x128xbf16>
    tpu.vector_store %arg6[%c0_14, %c0_15], %20 {strides = array<i32>} : memref<128x128xbf16, #tpu.memory_space<vmem>>, vector<128x128xbf16>,
    return
  }
  func.func @transform_1(%arg0: i32, %arg1: memref<128xi32, #tpu.memory_space<smem>>) -> (i32, i32) {
    %c0_i32 = arith.constant 0 : i32
    %c0_i32_0 = arith.constant 0 : i32
    %c0_i32_1 = arith.constant 0 : i32
    return %c0_i32, %c0_i32_0 : i32, i32
  }
  func.func @transform_2(%arg0: i32, %arg1: memref<128xi32, #tpu.memory_space<smem>>) -> (i32, i32) {
    %c0_i32 = arith.constant 0 : i32
    %c0_i32_0 = arith.constant 0 : i32
    %c0_i32_1 = arith.constant 0 : i32
    return %c0_i32, %c0_i32_0 : i32, i32
  }
  func.func @transform_3(%arg0: i32, %arg1: memref<128xi32, #tpu.memory_space<smem>>) -> (i32, i32) {
    %c0_i32 = arith.constant 0 : i32
    %c0_i32_0 = arith.constant 0 : i32
    %c0_i32_1 = arith.constant 0 : i32
    return %c0_i32, %c0_i32_0 : i32, i32
  }
  func.func @transform_4(%arg0: i32, %arg1: memref<128xi32, #tpu.memory_space<smem>>) -> (i32, i32) {
    %c0_i32 = arith.constant 0 : i32
    %c0_i32_0 = arith.constant 0 : i32
    return %arg0, %c0_i32 : i32, i32
  }
}

</mosaic_0001>

<llo_original>
// kernel: multiprop_forward.1
$region0: #{multiprop_forward.1}
  #allocation0 [shape = 'u32[]', space=smem, size = 0x4, offset = 0x4, fixed_abs, tag = 'smem constant byte address 0x4 - core index']
  #allocation1 [shape = 'u32[72,128]{1,0:T(1,128)}', space=vmem, size = 0x9000, scoped, tag = 'internal scratch']
  #allocation2 [shape = 's32[128,128]{1,0:T(8,128)}', space=vmem, size = 0x10000, scoped, tag = 'scratch operand']
  #allocation3 [shape = 's32[1]{0}', space=sflag, size = 0x4, scoped, tag = 'scratch operand']
  #allocation4 [shape = 's32[1]{0}', space=sflag, size = 0x4, scoped, tag = 'scoped memory for multiprop_forward.1']
  #allocation5 [shape = 'u8[512]{0}', space=smem, size = 0x200, scoped, tag = 'prefetched SMEM operand 0']
  #allocation12 [shape = 's32[]', space=sflag, size = 0x4, offset = 0, fixed_abs, tag = 'sflag constant byte address 0x0 - dummy sync flag']
  #allocation13 [shape = 's32[]', space=sflag, size = 0x4, offset = 0, fixed_abs, tag = 'sflag constant byte address 0x0 - dummy sync flag']
  #allocation14 [shape = 'u32[]', space=smem, size = 0x4, offset = 0x44, fixed_abs, tag = 'smem constant byte address 0x44 - assertion arg 0']
  #allocation15 [shape = 'u32[]', space=smem, size = 0x4, offset = 0x48, fixed_abs, tag = 'smem constant byte address 0x48 - assertion arg 1']
  %s0 = inlined_call_operand.hbm [shape: s32[128], index: 0, kind: input, shape index: {}]
  %s1 = inlined_call_operand.hbm [shape: u32[64,128], index: 1, kind: input, shape index: {}]
  %s2 = inlined_call_operand.hbm [shape: bf16[128,128], index: 2, kind: input, shape index: {}]
  %s3 = inlined_call_operand.hbm [shape: bf16[128,128], index: 3, kind: input, shape index: {}]
  %s4 = inlined_call_operand.vmem [shape: f32[1,128], index: 4, kind: input, shape index: {}]
  %s5 = inlined_call_operand.hbm [shape: bf16[128,128], index: 5, kind: output, shape index: {}]
  %s6 = sld [smem:[#allocation0]]
  $region48: #{multiprop_forward.1} parent=0
    _
  %s8 = ssub.s32 1, %s6
  %s9 = scalar_select 0, %s8, %s6
  %s11 = sshll.u32 %s0, 4
  %s12 = int_to_ptr.hbm [resolvable:$true] %s11
  %14 = dma.hbm_to_smem %s12, 16, [#allocation5], [#allocation4]
  %16 = dma.done [#allocation4], 16
  %17 = sfence
  $region1: #{multiprop_forward.1} parent=0
    #allocation6 [shape = 'u8[32768]{0}', space=vmem, size = 0x8000, scoped, tag = 'input window, operand 2, single buffered']
    #allocation7 [shape = 's32[1]{0}', space=sflag, size = 0x4, scoped, tag = 'scoped memory for multiprop_forward.1']
    #allocation8 [shape = 's32[1]{0}', space=sflag, size = 0x4, scoped, tag = 'scoped memory for multiprop_forward.1']
    #allocation9 [shape = 'u8[32768]{0}', space=vmem, size = 0x8000, scoped, tag = 'input window, operand 3, single buffered']
    #allocation10 [shape = 's32[1]{0}', space=sflag, size = 0x4, scoped, tag = 'scoped memory for multiprop_forward.1']
    #allocation11 [shape = 'u8[32768]{0}', space=vmem, size = 0x8000, scoped, tag = 'output window, operand 0, single buffered']
    %18 = vsyncpa [#allocation7], 0
    %19 = vsyncpa [#allocation10], 0
    %20 = vsyncpa [#allocation8], 0
    // Predicated region
    $region2: #{multiprop_forward.1} parent=1 // pred_check
      _
    $region3: #{multiprop_forward.1} parent=1 // pred_check_branch
      %22 = sbr.rel (0) target = $region5
    $region4: #{multiprop_forward.1} parent=1 // pred_region
      %24 = vsyncadd [#allocation7], 0
      %s25 = sshll.u32 %s2, 4
      %s26 = int_to_ptr.hbm [resolvable:$true] %s25
      %s27 = sshll.u32 [#allocation6], 4
      %s28 = int_to_ptr.vmem [resolvable:$true] %s27
      %33 = dma.hbm_to_vmem [thread:$0]  %s26, 1024, %s28, [#allocation7], 64, 64, 4
    $region5: #{multiprop_forward.1} parent=1 // pred_fallthru
      _
    // Predicated region
    $region6: #{multiprop_forward.1} parent=1 // pred_check
      _
    $region7: #{multiprop_forward.1} parent=1 // pred_check_branch
      %35 = sbr.rel (0) target = $region9
    $region8: #{multiprop_forward.1} parent=1 // pred_region
      %37 = vsyncadd [#allocation10], 0
      %s38 = sshll.u32 %s3, 4
      %s39 = int_to_ptr.hbm [resolvable:$true] %s38
      %s40 = sshll.u32 [#allocation9], 4
      %s41 = int_to_ptr.vmem [resolvable:$true] %s40
      %46 = dma.hbm_to_vmem [thread:$0]  %s39, 1024, %s41, [#allocation10], 64, 64, 4
    $region9: #{multiprop_forward.1} parent=1 // pred_fallthru
      _
    // Predicated region
    $region10: #{multiprop_forward.1} parent=1 // pred_check
      _
    $region11: #{multiprop_forward.1} parent=1 // pred_check_branch
      %48 = sbr.rel (0) target = $region13
    $region12: #{multiprop_forward.1} parent=1 // pred_region
      _
    $region13: #{multiprop_forward.1} parent=1 // pred_fallthru
      _
    // Predicated region
    $region14: #{multiprop_forward.1} parent=1 // pred_check
      _
    $region15: #{multiprop_forward.1} parent=1 // pred_check_branch
      %50 = sbr.rel (0) target = $region17
    $region16: #{multiprop_forward.1} parent=1 // pred_region
      %52 = dma.done [#allocation7], 1024
    $region17: #{multiprop_forward.1} parent=1 // pred_fallthru
      _
    // Predicated region
    $region18: #{multiprop_forward.1} parent=1 // pred_check
      _
    $region19: #{multiprop_forward.1} parent=1 // pred_check_branch
      %54 = sbr.rel (0) target = $region21
    $region20: #{multiprop_forward.1} parent=1 // pred_region
      %56 = dma.done [#allocation10], 1024
    $region21: #{multiprop_forward.1} parent=1 // pred_fallthru
      _
    %s57 = smul.u32 0, 128
    loop: start=0, step=1, limit=128
    $region22: #{multiprop_forward.1} parent=1 // loop_pre_header
      _
    $region23: #{multiprop_forward.1} parent=1 // loop_header
      %s59 = sphi 0, %s63
      %p60 = scmp.ge.s32.totalorder %s59, 128
    $region24: #{multiprop_forward.1} parent=1 // loop_header_branch
      %62 = sbr.rel (%p60) target = $region28
    $region25: #{multiprop_forward.1} parent=1 // loop_body
      %s64 = sadd.s32 %s57, %s59
      %s65 = sld [smem:[#allocation5 + %s64]]
      %s66 = scalar_lea.hbm %s1, %s65
      %s67 = scalar_lea.vmem [#allocation2], %s59
      // Predicated region
      $region29: #{multiprop_forward.1} parent=25 // pred_check
        _
      $region30: #{multiprop_forward.1} parent=25 // pred_check_branch
        %69 = sbr.rel target = $region32
      $region31: #{multiprop_forward.1} parent=25 // pred_region
        %70 = sst [smem:[#allocation14]] [#allocation13]
        %71 = sst [smem:[#allocation15]] [#allocation12]
      $region32: #{multiprop_forward.1} parent=25 // pred_fallthru
        _
      %73 = shalt.err (0)
      %s75 = sshll.u32 %s66, 4
      %s76 = int_to_ptr.hbm [resolvable:$true] %s75
      %s77 = sshll.u32 %s67, 4
      %s78 = int_to_ptr.vmem [resolvable:$true] %s77
      %80 = dma.hbm_to_vmem [thread:$0]  %s76, 16, %s78, [#allocation3]
    $region26: #{multiprop_forward.1} parent=1 // loop_footer
      %s63 = sadd.s32 1, %s59
    $region27: #{multiprop_forward.1} parent=1 // loop_footer_branch
      %58 = sbr.rel target = $region23
    $region28: #{multiprop_forward.1} parent=1 // loop_exit
      _
    loop: start=0, step=1, limit=128
    $region33: #{multiprop_forward.1} parent=1 // loop_pre_header
      _
    $region34: #{multiprop_forward.1} parent=1 // loop_header
      %s82 = sphi 0, %s86
      %p83 = scmp.ge.s32.totalorder %s82, 128
    $region35: #{multiprop_forward.1} parent=1 // loop_header_branch
      %85 = sbr.rel (%p83) target = $region39
    $region36: #{multiprop_forward.1} parent=1 // loop_body
      %s87 = smul.u32 1, 1
      %s88 = sshll.u32 %s87, 4
      %89 = dma.done [#allocation3], %s88
    $region37: #{multiprop_forward.1} parent=1 // loop_footer
      %s86 = sadd.s32 1, %s82
    $region38: #{multiprop_forward.1} parent=1 // loop_footer_branch
      %81 = sbr.rel target = $region34
    $region39: #{multiprop_forward.1} parent=1 // loop_exit
      _
    %v90 = vld [vmem:[#allocation2] sm:$0xff]
    %v91 = vld [vmem:[#allocation2 + $0x8] sm:$0xff]
    %v92 = vld [vmem:[#allocation2 + $0x10] sm:$0xff]
    %v93 = vld [vmem:[#allocation2 + $0x18] sm:$0xff]
    %v94 = vld [vmem:[#allocation2 + $0x20] sm:$0xff]
    %v95 = vld [vmem:[#allocation2 + $0x28] sm:$0xff]
    %v96 = vld [vmem:[#allocation2 + $0x30] sm:$0xff]
    %v97 = vld [vmem:[#allocation2 + $0x38] sm:$0xff]
    %v98 = vld [vmem:[#allocation2 + $0x40] sm:$0xff]
    %v99 = vld [vmem:[#allocation2 + $0x48] sm:$0xff]
    %v100 = vld [vmem:[#allocation2 + $0x50] sm:$0xff]
    %v101 = vld [vmem:[#allocation2 + $0x58] sm:$0xff]
    %v102 = vld [vmem:[#allocation2 + $0x60] sm:$0xff]
    %v103 = vld [vmem:[#allocation2 + $0x68] sm:$0xff]
    %v104 = vld [vmem:[#allocation2 + $0x70] sm:$0xff]
    %v105 = vld [vmem:[#allocation2 + $0x78] sm:$0xff]
    %v106 = vshll.u32 %v90, 16
    %v107 = vshll.u32 %v91, 16
    %v108 = vshll.u32 %v92, 16
    %v109 = vshll.u32 %v93, 16
    %v110 = vshll.u32 %v94, 16
    %v111 = vshll.u32 %v95, 16
    %v112 = vshll.u32 %v96, 16
    %v113 = vshll.u32 %v97, 16
    %v114 = vshll.u32 %v98, 16
    %v115 = vshll.u32 %v99, 16
    %v116 = vshll.u32 %v100, 16
    %v117 = vshll.u32 %v101, 16
    %v118 = vshll.u32 %v102, 16
    %v119 = vshll.u32 %v103, 16
    %v120 = vshll.u32 %v104, 16
    %v121 = vshll.u32 %v105, 16
    %v138 = vpack.c.bf16 %v107, %v106
    %v139 = vpack.c.bf16 %v109, %v108
    %v140 = vpack.c.bf16 %v111, %v110
    %v141 = vpack.c.bf16 %v113, %v112
    %v142 = vpack.c.bf16 %v115, %v114
    %v143 = vpack.c.bf16 %v117, %v116
    %v144 = vpack.c.bf16 %v119, %v118
    %v145 = vpack.c.bf16 %v121, %v120
    %v146 = vand.u32 %v90, 4294901760
    %v147 = vand.u32 %v91, 4294901760
    %v148 = vand.u32 %v92, 4294901760
    %v149 = vand.u32 %v93, 4294901760
    %v150 = vand.u32 %v94, 4294901760
    %v151 = vand.u32 %v95, 4294901760
    %v152 = vand.u32 %v96, 4294901760
    %v153 = vand.u32 %v97, 4294901760
    %v154 = vand.u32 %v98, 4294901760
    %v155 = vand.u32 %v99, 4294901760
    %v156 = vand.u32 %v100, 4294901760
    %v157 = vand.u32 %v101, 4294901760
    %v158 = vand.u32 %v102, 4294901760
    %v159 = vand.u32 %v103, 4294901760
    %v160 = vand.u32 %v104, 4294901760
    %v161 = vand.u32 %v105, 4294901760
    %v178 = vpack.c.bf16 %v147, %v146
    %v179 = vpack.c.bf16 %v149, %v148
    %v180 = vpack.c.bf16 %v151, %v150
    %v181 = vpack.c.bf16 %v153, %v152
    %v182 = vpack.c.bf16 %v155, %v154
    %v183 = vpack.c.bf16 %v157, %v156
    %v184 = vpack.c.bf16 %v159, %v158
    %v185 = vpack.c.bf16 %v161, %v160
    %v186 = vld [vmem:[#allocation6] sm:$0xf]
    %v187 = vld [vmem:[#allocation6 + $0x4] sm:$0xf]
    %v188 = vld [vmem:[#allocation6 + $0x8] sm:$0xf]
    %v189 = vld [vmem:[#allocation6 + $0xc] sm:$0xf]
    %v190 = vld [vmem:[#allocation6 + $0x10] sm:$0xf]
    %v191 = vld [vmem:[#allocation6 + $0x14] sm:$0xf]
    %v192 = vld [vmem:[#allocation6 + $0x18] sm:$0xf]
    %v193 = vld [vmem:[#allocation6 + $0x1c] sm:$0xf]
    %v194 = vld [vmem:[#allocation6 + $0x20] sm:$0xf]
    %v195 = vld [vmem:[#allocation6 + $0x24] sm:$0xf]
    %v196 = vld [vmem:[#allocation6 + $0x28] sm:$0xf]
    %v197 = vld [vmem:[#allocation6 + $0x2c] sm:$0xf]
    %v198 = vld [vmem:[#allocation6 + $0x30] sm:$0xf]
    %v199 = vld [vmem:[#allocation6 + $0x34] sm:$0xf]
    %v200 = vld [vmem:[#allocation6 + $0x38] sm:$0xf]
    %v201 = vld [vmem:[#allocation6 + $0x3c] sm:$0xf]
    %v202 = vld [vmem:[#allocation9] sm:$0xf]
    %v203 = vld [vmem:[#allocation9 + $0x4] sm:$0xf]
    %v204 = vld [vmem:[#allocation9 + $0x8] sm:$0xf]
    %v205 = vld [vmem:[#allocation9 + $0xc] sm:$0xf]
    %v206 = vld [vmem:[#allocation9 + $0x10] sm:$0xf]
    %v207 = vld [vmem:[#allocation9 + $0x14] sm:$0xf]
    %v208 = vld [vmem:[#allocation9 + $0x18] sm:$0xf]
    %v209 = vld [vmem:[#allocation9 + $0x1c] sm:$0xf]
    %v210 = vld [vmem:[#allocation9 + $0x20] sm:$0xf]
    %v211 = vld [vmem:[#allocation9 + $0x24] sm:$0xf]
    %v212 = vld [vmem:[#allocation9 + $0x28] sm:$0xf]
    %v213 = vld [vmem:[#allocation9 + $0x2c] sm:$0xf]
    %v214 = vld [vmem:[#allocation9 + $0x30] sm:$0xf]
    %v215 = vld [vmem:[#allocation9 + $0x34] sm:$0xf]
    %v216 = vld [vmem:[#allocation9 + $0x38] sm:$0xf]
    %v217 = vld [vmem:[#allocation9 + $0x3c] sm:$0xf]
    %v234 = vunpack.c.l.b16 %v202
    %v235 = vunpack.c.l.b16 %v203
    %v236 = vunpack.c.l.b16 %v204
    %v237 = vunpack.c.l.b16 %v205
    %v238 = vunpack.c.l.b16 %v206
    %v239 = vunpack.c.l.b16 %v207
    %v240 = vunpack.c.l.b16 %v208
    %v241 = vunpack.c.l.b16 %v209
    %v242 = vunpack.c.l.b16 %v210
    %v243 = vunpack.c.l.b16 %v211
    %v244 = vunpack.c.l.b16 %v212
    %v245 = vunpack.c.l.b16 %v213
    %v246 = vunpack.c.l.b16 %v214
    %v247 = vunpack.c.l.b16 %v215
    %v248 = vunpack.c.l.b16 %v216
    %v249 = vunpack.c.l.b16 %v217
    %v250 = vpack.c.b16 %v235, %v234
    %v251 = vpack.c.b16 %v237, %v236
    %v252 = vpack.c.b16 %v239, %v238
    %v253 = vpack.c.b16 %v241, %v240
    %v254 = vpack.c.b16 %v243, %v242
    %v255 = vpack.c.b16 %v245, %v244
    %v256 = vpack.c.b16 %v247, %v246
    %v257 = vpack.c.b16 %v249, %v248
    %266 = vmatpush.bf16.msra.mxu0 %v257
    %267 = vmatpush.bf16.msra.mxu0 %v256
    %268 = vmatpush.bf16.msra.mxu0 %v255
    %269 = vmatpush.bf16.msra.mxu0 %v254
    %270 = vmatpush.bf16.msra.mxu0 %v253
    %271 = vmatpush.bf16.msra.mxu0 %v252
    %272 = vmatpush.bf16.msra.mxu0 %v251
    %273 = vmatpush.bf16.msra.mxu0 %v250
    %274 = vmatmul.bf16.gmra.mxu0 %v178
    %v275 = vpop.f32.mrf.mxu0
    %v276 = vadd.f32 0.0, %v275
    %v277 = vpop.f32.mrf.mxu0
    %v278 = vadd.f32 0.0, %v277
    %279 = vmatmul.bf16.gmra.mxu0 %v179
    %v280 = vpop.f32.mrf.mxu0
    %v281 = vadd.f32 0.0, %v280
    %v282 = vpop.f32.mrf.mxu0
    %v283 = vadd.f32 0.0, %v282
    %284 = vmatmul.bf16.gmra.mxu0 %v180
    %v285 = vpop.f32.mrf.mxu0
    %v286 = vadd.f32 0.0, %v285
    %v287 = vpop.f32.mrf.mxu0
    %v288 = vadd.f32 0.0, %v287
    %289 = vmatmul.bf16.gmra.mxu0 %v181
    %v290 = vpop.f32.mrf.mxu0
    %v291 = vadd.f32 0.0, %v290
    %v292 = vpop.f32.mrf.mxu0
    %v293 = vadd.f32 0.0, %v292
    %294 = vmatmul.bf16.gmra.mxu0 %v182
    %v295 = vpop.f32.mrf.mxu0
    %v296 = vadd.f32 0.0, %v295
    %v297 = vpop.f32.mrf.mxu0
    %v298 = vadd.f32 0.0, %v297
    %299 = vmatmul.bf16.gmra.mxu0 %v183
    %v300 = vpop.f32.mrf.mxu0
    %v301 = vadd.f32 0.0, %v300
    %v302 = vpop.f32.mrf.mxu0
    %v303 = vadd.f32 0.0, %v302
    %304 = vmatmul.bf16.gmra.mxu0 %v184
    %v305 = vpop.f32.mrf.mxu0
    %v306 = vadd.f32 0.0, %v305
    %v307 = vpop.f32.mrf.mxu0
    %v308 = vadd.f32 0.0, %v307
    %309 = vmatmul.bf16.gmra.mxu0 %v185
    %v310 = vpop.f32.mrf.mxu0
    %v311 = vadd.f32 0.0, %v310
    %v312 = vpop.f32.mrf.mxu0
    %v313 = vadd.f32 0.0, %v312
    %314 = vdwg.mxu0
    %v331 = vunpack.c.l.b16 %v186
    %v332 = vunpack.c.l.b16 %v187
    %v333 = vunpack.c.l.b16 %v188
    %v334 = vunpack.c.l.b16 %v189
    %v335 = vunpack.c.l.b16 %v190
    %v336 = vunpack.c.l.b16 %v191
    %v337 = vunpack.c.l.b16 %v192
    %v338 = vunpack.c.l.b16 %v193
    %v339 = vunpack.c.l.b16 %v194
    %v340 = vunpack.c.l.b16 %v195
    %v341 = vunpack.c.l.b16 %v196
    %v342 = vunpack.c.l.b16 %v197
    %v343 = vunpack.c.l.b16 %v198
    %v344 = vunpack.c.l.b16 %v199
    %v345 = vunpack.c.l.b16 %v200
    %v346 = vunpack.c.l.b16 %v201
    %v347 = vpack.c.b16 %v332, %v331
    %v348 = vpack.c.b16 %v334, %v333
    %v349 = vpack.c.b16 %v336, %v335
    %v350 = vpack.c.b16 %v338, %v337
    %v351 = vpack.c.b16 %v340, %v339
    %v352 = vpack.c.b16 %v342, %v341
    %v353 = vpack.c.b16 %v344, %v343
    %v354 = vpack.c.b16 %v346, %v345
    %363 = vmatpush.bf16.msra.mxu0 %v354
    %364 = vmatpush.bf16.msra.mxu0 %v353
    %365 = vmatpush.bf16.msra.mxu0 %v352
    %366 = vmatpush.bf16.msra.mxu0 %v351
    %367 = vmatpush.bf16.msra.mxu0 %v350
    %368 = vmatpush.bf16.msra.mxu0 %v349
    %369 = vmatpush.bf16.msra.mxu0 %v348
    %370 = vmatpush.bf16.msra.mxu0 %v347
    %371 = vmatmul.bf16.gmra.mxu0 %v138
    %v372 = vpop.f32.mrf.mxu0
    %v373 = vadd.f32 %v276, %v372
    %v374 = vpop.f32.mrf.mxu0
    %v375 = vadd.f32 %v278, %v374
    %376 = vmatmul.bf16.gmra.mxu0 %v139
    %v377 = vpop.f32.mrf.mxu0
    %v378 = vadd.f32 %v281, %v377
    %v379 = vpop.f32.mrf.mxu0
    %v380 = vadd.f32 %v283, %v379
    %381 = vmatmul.bf16.gmra.mxu0 %v140
    %v382 = vpop.f32.mrf.mxu0
    %v383 = vadd.f32 %v286, %v382
    %v384 = vpop.f32.mrf.mxu0
    %v385 = vadd.f32 %v288, %v384
    %386 = vmatmul.bf16.gmra.mxu0 %v141
    %v387 = vpop.f32.mrf.mxu0
    %v388 = vadd.f32 %v291, %v387
    %v389 = vpop.f32.mrf.mxu0
    %v390 = vadd.f32 %v293, %v389
    %391 = vmatmul.bf16.gmra.mxu0 %v142
    %v392 = vpop.f32.mrf.mxu0
    %v393 = vadd.f32 %v296, %v392
    %v394 = vpop.f32.mrf.mxu0
    %v395 = vadd.f32 %v298, %v394
    %396 = vmatmul.bf16.gmra.mxu0 %v143
    %v397 = vpop.f32.mrf.mxu0
    %v398 = vadd.f32 %v301, %v397
    %v399 = vpop.f32.mrf.mxu0
    %v400 = vadd.f32 %v303, %v399
    %401 = vmatmul.bf16.gmra.mxu0 %v144
    %v402 = vpop.f32.mrf.mxu0
    %v403 = vadd.f32 %v306, %v402
    %v404 = vpop.f32.mrf.mxu0
    %v405 = vadd.f32 %v308, %v404
    %406 = vmatmul.bf16.gmra.mxu0 %v145
    %v407 = vpop.f32.mrf.mxu0
    %v408 = vadd.f32 %v311, %v407
    %v409 = vpop.f32.mrf.mxu0
    %v410 = vadd.f32 %v313, %v409
    %411 = vdwg.mxu0
    %v412 = vld [vmem:[%s4] sm:$0x1]
    %v414 = vperm.slane %v412, 0
    %v416 = vadd.f32 %v373, %v414
    %v417 = vadd.f32 %v375, %v414
    %v418 = vadd.f32 %v378, %v414
    %v419 = vadd.f32 %v380, %v414
    %v420 = vadd.f32 %v383, %v414
    %v421 = vadd.f32 %v385, %v414
    %v422 = vadd.f32 %v388, %v414
    %v423 = vadd.f32 %v390, %v414
    %v424 = vadd.f32 %v393, %v414
    %v425 = vadd.f32 %v395, %v414
    %v426 = vadd.f32 %v398, %v414
    %v427 = vadd.f32 %v400, %v414
    %v428 = vadd.f32 %v403, %v414
    %v429 = vadd.f32 %v405, %v414
    %v430 = vadd.f32 %v408, %v414
    %v431 = vadd.f32 %v410, %v414
    %v432 = vpack.c.bf16 %v416, %v416
    %v433 = vpack.c.bf16 %v417, %v417
    %v434 = vpack.c.bf16 %v418, %v418
    %v435 = vpack.c.bf16 %v419, %v419
    %v436 = vpack.c.bf16 %v420, %v420
    %v437 = vpack.c.bf16 %v421, %v421
    %v438 = vpack.c.bf16 %v422, %v422
    %v439 = vpack.c.bf16 %v423, %v423
    %v440 = vpack.c.bf16 %v424, %v424
    %v441 = vpack.c.bf16 %v425, %v425
    %v442 = vpack.c.bf16 %v426, %v426
    %v443 = vpack.c.bf16 %v427, %v427
    %v444 = vpack.c.bf16 %v428, %v428
    %v445 = vpack.c.bf16 %v429, %v429
    %v446 = vpack.c.bf16 %v430, %v430
    %v447 = vpack.c.bf16 %v431, %v431
    %448 = vst [vmem:[#allocation11] sm:$0xf] %v432
    %449 = vst [vmem:[#allocation11 + $0x4] sm:$0xf] %v433
    %450 = vst [vmem:[#allocation11 + $0x8] sm:$0xf] %v434
    %451 = vst [vmem:[#allocation11 + $0xc] sm:$0xf] %v435
    %452 = vst [vmem:[#allocation11 + $0x10] sm:$0xf] %v436
    %453 = vst [vmem:[#allocation11 + $0x14] sm:$0xf] %v437
    %454 = vst [vmem:[#allocation11 + $0x18] sm:$0xf] %v438
    %455 = vst [vmem:[#allocation11 + $0x1c] sm:$0xf] %v439
    %456 = vst [vmem:[#allocation11 + $0x20] sm:$0xf] %v440
    %457 = vst [vmem:[#allocation11 + $0x24] sm:$0xf] %v441
    %458 = vst [vmem:[#allocation11 + $0x28] sm:$0xf] %v442
    %459 = vst [vmem:[#allocation11 + $0x2c] sm:$0xf] %v443
    %460 = vst [vmem:[#allocation11 + $0x30] sm:$0xf] %v444
    %461 = vst [vmem:[#allocation11 + $0x34] sm:$0xf] %v445
    %462 = vst [vmem:[#allocation11 + $0x38] sm:$0xf] %v446
    %463 = vst [vmem:[#allocation11 + $0x3c] sm:$0xf] %v447
    // Predicated region
    $region40: #{multiprop_forward.1} parent=1 // pred_check
      _
    $region41: #{multiprop_forward.1} parent=1 // pred_check_branch
      %465 = sbr.rel (0) target = $region43
    $region42: #{multiprop_forward.1} parent=1 // pred_region
      %467 = vsyncadd [#allocation8], 0
      %s468 = sshll.u32 [#allocation11], 4
      %s469 = int_to_ptr.vmem [resolvable:$true] %s468
      %s470 = sshll.u32 %s5, 4
      %s471 = int_to_ptr.hbm [resolvable:$true] %s470
      %476 = dma.vmem_to_hbm [thread:$0]  %s469, 1024, %s471, [#allocation8], 64, 64, 4
    $region43: #{multiprop_forward.1} parent=1 // pred_fallthru
      _
    // Predicated region
    $region44: #{multiprop_forward.1} parent=1 // pred_check
      _
    $region45: #{multiprop_forward.1} parent=1 // pred_check_branch
      %478 = sbr.rel (0) target = $region47
    $region46: #{multiprop_forward.1} parent=1 // pred_region
      %480 = dma.done [#allocation8], 1024
    $region47: #{multiprop_forward.1} parent=1 // pred_fallthru
      _
    %481 = vsyncpa [#allocation7], 1
    %482 = vsyncpa [#allocation10], 1
    %483 = vsyncpa [#allocation8], 1
  %484 = vsyncmov [#allocation3]
  %s485 = vpop.sfrf %484
  %p486 = scmp.eq.s32.totalorder %s485, 0
  %p487 = pneg %p486
  %489 = shalt.err (%p487)

</llo_original>
